<compile_context>
chip_gen: v7x
topology: tpu7x:2x2x1
jax: 0.10.0
libtpu: 0.0.40
codegen_flags: <defaults>
</compile_context>

<pallas_src>
import functools

import numpy as np
import jax
import jax.numpy as jnp
from jax.experimental import pallas as pl
from jax.experimental.pallas import tpu as pltpu

LN_EPS = 1e-5
_INV_SQRT2 = 0.7071067811865476


# ------------------------------ small utilities -------------------------------
def _vmem_capacity_bytes():
    try:
        info = pltpu.get_tpu_info()
        return int(getattr(info, "vmem_capacity_bytes", 64 * 1024 * 1024))
    except Exception:
        return 64 * 1024 * 1024  # conservative (v7x-sized) fallback


def _pick_tile(total, target, align=128):
    """Largest multiple of `align` <= target that divides `total`."""
    if total <= target:
        return total
    t = max(align, (min(target, total) // align) * align)
    while total % t:
        t -= align
    return t


def _spec(shape, index_map, buffers=None):
    """BlockSpec with an optional explicit pipeline buffer count."""
    if buffers is not None and hasattr(pl, "Buffered"):
        try:
            return pl.BlockSpec(shape, index_map,
                                pipeline_mode=pl.Buffered(buffers))
        except TypeError:  # very old jax without pipeline_mode kwarg
            pass
    return pl.BlockSpec(shape, index_map)


# ----------------------------- in-kernel helpers -------------------------------
def _layernorm(x, gamma, beta):
    # PyTorch nn.LayerNorm: biased variance over last dim, eps inside rsqrt.
    mu = jnp.mean(x, axis=-1, keepdims=True)
    var = jnp.mean((x - mu) ** 2, axis=-1, keepdims=True)
    return (x - mu) * jax.lax.rsqrt(var + LN_EPS) * gamma + beta


def _gelu_exact(x):
    # nn.GELU(approximate='none'): 0.5 * x * (1 + erf(x / sqrt(2)))
    return 0.5 * x * (1.0 + jax.lax.erf(x * _INV_SQRT2))


def _bf16_dot(x, w_bf16):
    # bf16 MXU inputs, f32 accumulation.
    return jnp.dot(x.astype(jnp.bfloat16), w_bf16,
                   preferred_element_type=jnp.float32)


# ------------------------------- Pallas kernels --------------------------------
def backbone_kernel(x_ref, w_ref, b_ref, g_ref, beta_ref, out_ref,
                    act_ref, acc_ref, *, tk):
    """Residual MLP blocks: x <- GELU(LN(x @ W_b + b_b)) + x, streamed over K.

    grid = (n_blocks, h // tk).  w_ref is the (tk, h) bf16 K-tile of block
    `blk`'s weight; act_ref holds the running activation K-chunked as
    (nk, B, tk) f32; acc_ref is the f32 (B, h) matmul accumulator.
    """
    blk = pl.program_id(0)
    k = pl.program_id(1)
    nb = pl.num_programs(0)
    nk = pl.num_programs(1)
    nk_static = act_ref.shape[0]
    rows = acc_ref.shape[0]
    inv_h = 1.0 / float(nk_static * tk)

    # Load the input activation once, at the very first grid step.
    @pl.when(jnp.logical_and(blk == 0, k == 0))
    def _():
        for i in range(nk_static):                 # static unroll, static slices
            act_ref[i] = x_ref[:, i * tk:(i + 1) * tk].astype(jnp.float32)

    # Zero the accumulator at the start of every block's K loop.
    @pl.when(k == 0)
    def _():
        acc_ref[...] = jnp.zeros_like(acc_ref)

    # Partial product for this K tile (bf16 MXU inputs, f32 accumulation).
    acc_ref[...] += _bf16_dot(act_ref[k], w_ref[...])

    # Finalize the block with a CHUNKED LayerNorm + GELU + residual so no
    # full-width (B, h) f32 temporaries (and their spills) are materialized.
    @pl.when(k == nk - 1)
    def _():
        # pass 1: per-row mean of (acc + bias)
        s = jnp.zeros((rows, 1), jnp.float32)
        for i in range(nk_static):
            sl = slice(i * tk, (i + 1) * tk)
            s = s + jnp.sum(acc_ref[:, sl] + b_ref[:, sl], axis=-1, keepdims=True)
        mu = s * inv_h
        # pass 2: per-row biased variance
        ss = jnp.zeros((rows, 1), jnp.float32)
        for i in range(nk_static):
            sl = slice(i * tk, (i + 1) * tk)
            d = acc_ref[:, sl] + b_ref[:, sl] - mu
            ss = ss + jnp.sum(d * d, axis=-1, keepdims=True)
        rstd = jax.lax.rsqrt(ss * inv_h + LN_EPS)
        # pass 3: normalize + GELU + residual, one (B, tk) chunk at a time
        for i in range(nk_static):
            sl = slice(i * tk, (i + 1) * tk)
            hchunk = ((acc_ref[:, sl] + b_ref[:, sl] - mu) * rstd
                      * g_ref[:, sl] + beta_ref[:, sl])
            act_ref[i] = _gelu_exact(hchunk) + act_ref[i]

    # After the last block, write the activation out once, as bf16.
    @pl.when(jnp.logical_and(blk == nb - 1, k == nk - 1))
    def _():
        for i in range(nk_static):
            out_ref[:, i * tk:(i + 1) * tk] = act_ref[i].astype(out_ref.dtype)


def lin1_kernel(act_ref, w_ref, b_ref, out_ref):
    """lin1 only: one wide (h, tn) bf16 weight column tile per grid step."""
    y = jnp.dot(act_ref[...], w_ref[...], preferred_element_type=jnp.float32)
    out_ref[...] = (y + b_ref[...]).astype(out_ref.dtype)


def projector_kernel(y_ref,
                     g0_ref, b0_ref, w1_ref, bias1_ref,
                     g1_ref, b1_ref, w2_ref, bias2_ref,
                     g2_ref, b2_ref, w3_ref, bias3_ref,
                     out_ref):
    """Projector MLP over a (tr, clip) row tile of the (B_pad*T, clip) view."""
    y = y_ref[...].astype(jnp.float32)
    y = _gelu_exact(_layernorm(y, g0_ref[...], b0_ref[...]))
    y = _bf16_dot(y, w1_ref[...]) + bias1_ref[...]
    y = _gelu_exact(_layernorm(y, g1_ref[...], b1_ref[...]))
    y = _bf16_dot(y, w2_ref[...]) + bias2_ref[...]
    y = _gelu_exact(_layernorm(y, g2_ref[...], b2_ref[...]))
    y = _bf16_dot(y, w3_ref[...]) + bias3_ref[...]
    out_ref[...] = y


# ------------------------------- python wrapper ---------------------------------
def brain_network_forward(x, params, *, n_blocks, out_dim, clip_size,
                          use_projector=True, tk=None, tn=None, tr=None):
    B, h = x.shape

    vmem_cap = _vmem_capacity_bytes()
    big_vmem = vmem_cap >= 100 * 1024 * 1024        # v5e/v6e: 128 MiB; v7x: 64 MiB
    vmem_limit = (100 if big_vmem else 48) * 1024 * 1024

    if tk is None:
        tk = _pick_tile(h, 1024 if big_vmem else 512)
    assert h % tk == 0 and tk % 128 == 0, (h, tk)
    nk = h // tk

    assert out_dim % clip_size == 0, (out_dim, clip_size)
    T = out_dim // clip_size
    ph = params["proj_w1"].shape[1]

    # Pad the tiny batch to a full 8-sublane tile (free: weight-BW bound).
    B_pad = max(8, ((B + 7) // 8) * 8)
    x_p = jnp.zeros((B_pad, h), jnp.float32).at[:B].set(x.astype(jnp.float32))

    # --------------------------------- backbone ----------------------------------
    bb_param_bytes = sum(int(params[k].size * params[k].dtype.itemsize)
                         for k in ("mlp_w", "mlp_b", "mlp_g", "mlp_beta"))
    backbone_cost = pl.CostEstimate(
        flops=2 * B_pad * h * h * n_blocks,
        transcendentals=B_pad * h * n_blocks,
        bytes_accessed=bb_param_bytes + 4 * B_pad * h + 2 * B_pad * h)

    backbone = pl.pallas_call(
        functools.partial(backbone_kernel, tk=tk),
        grid=(n_blocks, nk),
        out_shape=jax.ShapeDtypeStruct((B_pad, h), jnp.bfloat16),
        in_specs=[
            pl.BlockSpec((B_pad, h), lambda b, k: (0, 0)),          # x (resident)
            pl.BlockSpec((None, tk, h), lambda b, k: (b, k, 0)),    # W K-tile (bf16)
            pl.BlockSpec((None, 1, h), lambda b, k: (b, 0, 0)),     # bias
            pl.BlockSpec((None, 1, h), lambda b, k: (b, 0, 0)),     # LN gamma
            pl.BlockSpec((None, 1, h), lambda b, k: (b, 0, 0)),     # LN beta
        ],
        out_specs=pl.BlockSpec((B_pad, h), lambda b, k: (0, 0)),
        scratch_shapes=[
            pltpu.VMEM((nk, B_pad, tk), jnp.float32),   # running activation
            pltpu.VMEM((B_pad, h), jnp.float32),        # matmul accumulator
        ],
        compiler_params=pltpu.CompilerParams(
            dimension_semantics=("arbitrary", "arbitrary"),  # sequential blocks / K
            vmem_limit_bytes=vmem_limit),
        cost_estimate=backbone_cost,
    )
    act = backbone(x_p, params["mlp_w"], params["mlp_b"], params["mlp_g"],
                   params["mlp_beta"])
    # TODO(synk): v7x could split each block's output columns across the two
    # TensorCores (core-parallel) with a shared LN-stats reduction.

    # ----------------------------------- lin1 ------------------------------------
    if tn is None:
        tn = _pick_tile(out_dim, 2048 if big_vmem else 1024)
    assert out_dim % tn == 0 and tn % 128 == 0, (out_dim, tn)
    n_col = out_dim // tn

    lin1_dtype = jnp.bfloat16 if use_projector else jnp.float32
    lin1_w_bytes = int(params["lin1_w"].size * params["lin1_w"].dtype.itemsize)
    lin1_cost = pl.CostEstimate(
        flops=2 * B_pad * h * out_dim,
        transcendentals=0,
        bytes_accessed=(lin1_w_bytes + 4 * out_dim + 2 * B_pad * h
                        + B_pad * out_dim * jnp.dtype(lin1_dtype).itemsize))

    lin1 = pl.pallas_call(
        lin1_kernel,
        grid=(n_col,),
        out_shape=jax.ShapeDtypeStruct((B_pad, out_dim), lin1_dtype),
        in_specs=[
            _spec((B_pad, h), lambda t: (0, 0), buffers=1),          # act (resident)
            _spec((h, tn), lambda t: (0, t),
                  buffers=None if big_vmem else 3),                  # W column tile
            _spec((1, tn), lambda t: (0, t)),                        # bias column tile
        ],
        out_specs=pl.BlockSpec((B_pad, tn), lambda t: (0, t)),
        compiler_params=pltpu.CompilerParams(
            dimension_semantics=("parallel",),      # independent column tiles
            vmem_limit_bytes=vmem_limit),
        cost_estimate=lin1_cost,
    )
    y = lin1(act, params["lin1_w"], params["lin1_b"])

    if not use_projector:
        return y[:B]

    # --------------------------------- projector ----------------------------------
    rows = B_pad * T
    if tr is None:
        tr = _pick_tile(rows, 256, align=8)
    assert rows % tr == 0 and tr % 8 == 0, (rows, tr)
    n_row = rows // tr

    proj_param_bytes = sum(int(params[k].size * params[k].dtype.itemsize)
                           for k in ("proj_w1", "proj_w2", "proj_w3",
                                     "proj_bias1", "proj_bias2", "proj_bias3",
                                     "proj_g0", "proj_b0", "proj_g1", "proj_b1",
                                     "proj_g2", "proj_b2"))
    proj_cost = pl.CostEstimate(
        flops=2 * rows * (clip_size * ph + ph * ph + ph * clip_size),
        transcendentals=rows * (clip_size + 2 * ph),
        bytes_accessed=proj_param_bytes + rows * clip_size * (2 + 4))

    y2 = y.reshape(rows, clip_size)
    projector = pl.pallas_call(
        projector_kernel,
        grid=(n_row,),
        out_shape=jax.ShapeDtypeStruct((rows, clip_size), jnp.float32),
        in_specs=[
            pl.BlockSpec((tr, clip_size), lambda r: (r, 0)),         # lin1 row tile
            _spec((1, clip_size), lambda r: (0, 0), buffers=1),      # LN0 gamma
            _spec((1, clip_size), lambda r: (0, 0), buffers=1),      # LN0 beta
            _spec((clip_size, ph), lambda r: (0, 0), buffers=1),     # proj W1
            _spec((1, ph), lambda r: (0, 0), buffers=1),             # proj b1
            _spec((1, ph), lambda r: (0, 0), buffers=1),             # LN1 gamma
            _spec((1, ph), lambda r: (0, 0), buffers=1),             # LN1 beta
            _spec((ph, ph), lambda r: (0, 0), buffers=1),            # proj W2
            _spec((1, ph), lambda r: (0, 0), buffers=1),             # proj b2
            _spec((1, ph), lambda r: (0, 0), buffers=1),             # LN2 gamma
            _spec((1, ph), lambda r: (0, 0), buffers=1),             # LN2 beta
            _spec((ph, clip_size), lambda r: (0, 0), buffers=1),     # proj W3
            _spec((1, clip_size), lambda r: (0, 0), buffers=1),      # proj b3
        ],
        out_specs=pl.BlockSpec((tr, clip_size), lambda r: (r, 0)),
        compiler_params=pltpu.CompilerParams(
            dimension_semantics=("parallel",),        # independent row tiles
            vmem_limit_bytes=vmem_limit),
        cost_estimate=proj_cost,
    )
    out = projector(y2, params["proj_g0"], params["proj_b0"],
                    params["proj_w1"], params["proj_bias1"],
                    params["proj_g1"], params["proj_b1"],
                    params["proj_w2"], params["proj_bias2"],
                    params["proj_g2"], params["proj_b2"],
                    params["proj_w3"], params["proj_bias3"])

    return out.reshape(B_pad, T, clip_size)[:B]


# ----------------------------- deterministic params -----------------------------
def init_params(key, *, h, out_dim, clip_size, proj_hidden, n_blocks):
    ks = list(jax.random.split(key, 18))
    bf16 = jnp.bfloat16

    def w(k, shape, dtype=jnp.float32, scale=0.02):
        return (scale * jax.random.normal(k, shape)).astype(dtype)

    params = {
        # residual MLP blocks; weights pre-transposed to (in, out), bf16.
        "mlp_w":    w(ks[0], (n_blocks, h, h), bf16),
        "mlp_b":    w(ks[1], (n_blocks, 1, h)),
        "mlp_g":    1.0 + w(ks[2], (n_blocks, 1, h)),
        "mlp_beta": w(ks[3], (n_blocks, 1, h)),
        # lin1
        "lin1_w": w(ks[4], (h, out_dim), bf16),
        "lin1_b": w(ks[5], (1, out_dim)),
        # projector
        "proj_g0": 1.0 + w(ks[6], (1, clip_size)),
        "proj_b0": w(ks[7], (1, clip_size)),
        "proj_w1": w(ks[8], (clip_size, proj_hidden), bf16),
        "proj_bias1": w(ks[9], (1, proj_hidden)),
        "proj_g1": 1.0 + w(ks[10], (1, proj_hidden)),
        "proj_b1": w(ks[11], (1, proj_hidden)),
        "proj_w2": w(ks[12], (proj_hidden, proj_hidden), bf16),
        "proj_bias2": w(ks[13], (1, proj_hidden)),
        "proj_g2": 1.0 + w(ks[14], (1, proj_hidden)),
        "proj_b2": w(ks[15], (1, proj_hidden)),
        "proj_w3": w(ks[16], (proj_hidden, clip_size), bf16),
        "proj_bias3": w(ks[17], (1, clip_size)),
    }
    return params


# ------------------------------- pure-JAX reference ------------------------------
def reference_forward(x, p, *, n_blocks, clip_size, use_projector=True):
    # Same math as the kernels: bf16 matmul inputs, f32 accumulation/elementwise,
    # bf16 lin1->projector intermediate.
    x = x.astype(jnp.float32)
    residual = x
    for i in range(n_blocks):
        hloc = _bf16_dot(x, p["mlp_w"][i]) + p["mlp_b"][i]
        hloc = jax.nn.gelu(_layernorm(hloc, p["mlp_g"][i], p["mlp_beta"][i]),
                           approximate=False)
        x = hloc + residual
        residual = x
    y = _bf16_dot(x, p["lin1_w"]) + p["lin1_b"]
    if not use_projector:
        return y
    y = y.astype(jnp.bfloat16).astype(jnp.float32)   # kernel stores lin1 out as bf16
    B = y.shape[0]
    T = y.shape[1] // clip_size
    y = y.reshape(B * T, clip_size)
    y = jax.nn.gelu(_layernorm(y, p["proj_g0"], p["proj_b0"]), approximate=False)
    y = _bf16_dot(y, p["proj_w1"]) + p["proj_bias1"]
    y = jax.nn.gelu(_layernorm(y, p["proj_g1"], p["proj_b1"]), approximate=False)
    y = _bf16_dot(y, p["proj_w2"]) + p["proj_bias2"]
    y = jax.nn.gelu(_layernorm(y, p["proj_g2"], p["proj_b2"]), approximate=False)
    y = _bf16_dot(y, p["proj_w3"]) + p["proj_bias3"]
    return y.reshape(B, T, clip_size)


# --------------------------------------- main -------------------------------------
if __name__ == "__main__":
    # Small, lane-aligned stand-ins for (h=4096, out_dim, clip=768, proj_h=2048).
    B, H, OUT_DIM, CLIP, PROJ_H, N_BLOCKS = 2, 256, 256, 128, 256, 4

    key = jax.random.PRNGKey(0)
    kx, kp = jax.random.split(key)
    x = jax.random.normal(kx, (B, H), dtype=jnp.float32)
    params = init_params(kp, h=H, out_dim=OUT_DIM, clip_size=CLIP,
                         proj_hidden=PROJ_H, n_blocks=N_BLOCKS)

    out = brain_network_forward(x, params, n_blocks=N_BLOCKS, out_dim=OUT_DIM,
                                clip_size=CLIP, use_projector=True, tk=128)
    out = jax.block_until_ready(out)

    ref = jax.block_until_ready(
        reference_forward(x, params, n_blocks=N_BLOCKS, clip_size=CLIP))

    assert out.shape == (B, OUT_DIM // CLIP, CLIP), out.shape
    np.testing.assert_allclose(np.asarray(out), np.asarray(ref),
                               rtol=2e-3, atol=2e-3)
    print("KERNEL_OK")
</pallas_src>

<mosaic_0001>
module attributes {stable_mosaic.version = 11 : i64} {
  func.func @backbone_kernel(%arg0: i32, %arg1: i32, %arg2: memref<8x256xf32, #tpu.memory_space<vmem>>, %arg3: memref<1x128x256xbf16, #tpu.memory_space<vmem>>, %arg4: memref<1x1x256xf32, #tpu.memory_space<vmem>>, %arg5: memref<1x1x256xf32, #tpu.memory_space<vmem>>, %arg6: memref<1x1x256xf32, #tpu.memory_space<vmem>>, %arg7: memref<8x256xbf16, #tpu.memory_space<vmem>>, %arg8: memref<2x8x128xf32, #tpu.memory_space<vmem>>, %arg9: memref<8x256xf32, #tpu.memory_space<vmem>>) attributes {dimension_semantics = [#tpu.dimension_semantics<arbitrary>, #tpu.dimension_semantics<arbitrary>], iteration_bounds = array<i64: 4, 2>, scalar_prefetch = 0 : i64, scratch_operands = 2 : i64, tpu.core_type = #tpu.core_type<tc>, window_params = [{pipeline_mode = #tpu.pipeline_mode<synchronous>, transform_indices = @transform_0, window_bounds = array<i64: 8, 256>}, {transform_indices = @transform_1, window_bounds = array<i64: 1, 128, 256>}, {transform_indices = @transform_2, window_bounds = array<i64: 1, 1, 256>}, {transform_indices = @transform_3, window_bounds = array<i64: 1, 1, 256>}, {transform_indices = @transform_4, window_bounds = array<i64: 1, 1, 256>}, {pipeline_mode = #tpu.pipeline_mode<synchronous>, transform_indices = @transform_5, window_bounds = array<i64: 8, 256>}]} {
    %c0_i32 = arith.constant 0 : i32
    %0 = arith.cmpi eq, %arg0, %c0_i32 : i32
    %c0_i32_0 = arith.constant 0 : i32
    %1 = arith.cmpi eq, %arg1, %c0_i32_0 : i32
    %2 = arith.andi %0, %1 : i1
    %3 = arith.extui %2 : i1 to i32
    %c0_i32_1 = arith.constant 0 : i32
    %4 = arith.cmpi ne, %3, %c0_i32_1 : i32
    scf.if %4 {
      %c0_15 = arith.constant 0 : index
      %c0_16 = arith.constant 0 : index
      %26 = vector.load %arg2[%c0_15, %c0_16] : memref<8x256xf32, #tpu.memory_space<vmem>>, vector<8x128xf32>
      %c0_17 = arith.constant 0 : index
      %c0_18 = arith.constant 0 : index
      %c0_19 = arith.constant 0 : index
      %27 = vector.load %arg8[%c0_17, %c0_18, %c0_19] : memref<2x8x128xf32, #tpu.memory_space<vmem>>, vector<1x8x128xf32>
      %28 = vector.shape_cast %27 : vector<1x8x128xf32> to vector<8x128xf32>
      %29 = vector.shape_cast %26 : vector<8x128xf32> to vector<1x8x128xf32>
      tpu.vector_store %arg8[%c0_17, %c0_18, %c0_19], %29 {strides = array<i32>} : memref<2x8x128xf32, #tpu.memory_space<vmem>>, vector<1x8x128xf32>,
      %c0_20 = arith.constant 0 : index
      %c128 = arith.constant 128 : index
      %30 = vector.load %arg2[%c0_20, %c128] : memref<8x256xf32, #tpu.memory_space<vmem>>, vector<8x128xf32>
      %c1 = arith.constant 1 : index
      %c0_21 = arith.constant 0 : index
      %c0_22 = arith.constant 0 : index
      %31 = vector.load %arg8[%c1, %c0_21, %c0_22] : memref<2x8x128xf32, #tpu.memory_space<vmem>>, vector<1x8x128xf32>
      %32 = vector.shape_cast %31 : vector<1x8x128xf32> to vector<8x128xf32>
      %33 = vector.shape_cast %30 : vector<8x128xf32> to vector<1x8x128xf32>
      tpu.vector_store %arg8[%c1, %c0_21, %c0_22], %33 {strides = array<i32>} : memref<2x8x128xf32, #tpu.memory_space<vmem>>, vector<1x8x128xf32>,
    } else {
    }
    %c0_i32_2 = arith.constant 0 : i32
    %5 = arith.cmpi eq, %arg1, %c0_i32_2 : i32
    %6 = arith.extui %5 : i1 to i32
    %c0_i32_3 = arith.constant 0 : i32
    %7 = arith.cmpi ne, %6, %c0_i32_3 : i32
    scf.if %7 {
      %cst_15 = arith.constant 0.000000e+00 : f32
      %26 = vector.broadcast %cst_15 : f32 to vector<8x256xf32>
      %c0_16 = arith.constant 0 : index
      %c0_17 = arith.constant 0 : index
      %27 = vector.load %arg9[%c0_16, %c0_17] : memref<8x256xf32, #tpu.memory_space<vmem>>, vector<8x256xf32>
      tpu.vector_store %arg9[%c0_16, %c0_17], %26 {strides = array<i32>} : memref<8x256xf32, #tpu.memory_space<vmem>>, vector<8x256xf32>,
    } else {
    }
    %c0 = arith.constant 0 : index
    %c0_4 = arith.constant 0 : index
    %8 = vector.load %arg9[%c0, %c0_4] : memref<8x256xf32, #tpu.memory_space<vmem>>, vector<8x256xf32>
    %9 = arith.index_cast %arg1 : i32 to index
    %c0_5 = arith.constant 0 : index
    %c0_6 = arith.constant 0 : index
    %10 = vector.load %arg8[%9, %c0_5, %c0_6] : memref<2x8x128xf32, #tpu.memory_space<vmem>>, vector<1x8x128xf32>
    %11 = vector.shape_cast %10 : vector<1x8x128xf32> to vector<8x128xf32>
    %c0_7 = arith.constant 0 : index
    %c0_8 = arith.constant 0 : index
    %c0_9 = arith.constant 0 : index
    %12 = vector.load %arg3[%c0_7, %c0_8, %c0_9] : memref<1x128x256xbf16, #tpu.memory_space<vmem>>, vector<1x128x256xbf16>
    %13 = vector.shape_cast %12 : vector<1x128x256xbf16> to vector<128x256xbf16>
    %14 = arith.truncf %11 : vector<8x128xf32> to vector<8x128xbf16>
    %cst = arith.constant dense<0.000000e+00> : vector<8x256xf32>
    %15 = tpu.matmul %14, %13, %cst {dimension_numbers = #tpu.dot_dimension_numbers<[1], [0], [0], [1], [0, 0, 1, 1], [], []>} : vector<8x128xbf16>, vector<128x256xbf16>, vector<8x256xf32> -> vector<8x256xf32>
    %16 = arith.addf %8, %15 : vector<8x256xf32>
    %c0_10 = arith.constant 0 : index
    %c0_11 = arith.constant 0 : index
    %17 = vector.load %arg9[%c0_10, %c0_11] : memref<8x256xf32, #tpu.memory_space<vmem>>, vector<8x256xf32>
    tpu.vector_store %arg9[%c0_10, %c0_11], %16 {strides = array<i32>} : memref<8x256xf32, #tpu.memory_space<vmem>>, vector<8x256xf32>,
    %c1_i32 = arith.constant 1 : i32
    %18 = arith.cmpi eq, %arg1, %c1_i32 : i32
    %19 = arith.extui %18 : i1 to i32
    %c0_i32_12 = arith.constant 0 : i32
    %20 = arith.cmpi ne, %19, %c0_i32_12 : i32
    scf.if %20 {
      %cst_15 = arith.constant 0.000000e+00 : f32
      %26 = vector.broadcast %cst_15 : f32 to vector<8x1xf32>
      %c0_16 = arith.constant 0 : index
      %c0_17 = arith.constant 0 : index
      %27 = vector.load %arg9[%c0_16, %c0_17] : memref<8x256xf32, #tpu.memory_space<vmem>>, vector<8x128xf32>
      %c0_18 = arith.constant 0 : index
      %c0_19 = arith.constant 0 : index
      %c0_20 = arith.constant 0 : index
      %28 = vector.load %arg4[%c0_18, %c0_19, %c0_20] : memref<1x1x256xf32, #tpu.memory_space<vmem>>, vector<1x1x128xf32>
      %29 = vector.shape_cast %28 : vector<1x1x128xf32> to vector<1x128xf32>
      %30 = vector.broadcast %29 : vector<1x128xf32> to vector<8x128xf32>
      %31 = arith.addf %27, %30 : vector<8x128xf32>
      %cst_21 = arith.constant dense<0.000000e+00> : vector<8xf32>
      %32 = vector.multi_reduction <add>, %31, %cst_21 [1] : vector<8x128xf32> to vector<8xf32>
      %33 = vector.shape_cast %32 : vector<8xf32> to vector<8x1xf32>
      %34 = arith.addf %26, %33 : vector<8x1xf32>
      %c0_22 = arith.constant 0 : index
      %c128 = arith.constant 128 : index
      %35 = vector.load %arg9[%c0_22, %c128] : memref<8x256xf32, #tpu.memory_space<vmem>>, vector<8x128xf32>
      %c0_23 = arith.constant 0 : index
      %c0_24 = arith.constant 0 : index
      %c128_25 = arith.constant 128 : index
      %36 = vector.load %arg4[%c0_23, %c0_24, %c128_25] : memref<1x1x256xf32, #tpu.memory_space<vmem>>, vector<1x1x128xf32>
      %37 = vector.shape_cast %36 : vector<1x1x128xf32> to vector<1x128xf32>
      %38 = vector.broadcast %37 : vector<1x128xf32> to vector<8x128xf32>
      %39 = arith.addf %35, %38 : vector<8x128xf32>
      %cst_26 = arith.constant dense<0.000000e+00> : vector<8xf32>
      %40 = vector.multi_reduction <add>, %39, %cst_26 [1] : vector<8x128xf32> to vector<8xf32>
      %41 = vector.shape_cast %40 : vector<8xf32> to vector<8x1xf32>
      %42 = arith.addf %34, %41 : vector<8x1xf32>
      %cst_27 = arith.constant 3.906250e-03 : f32
      %43 = vector.broadcast %cst_27 : f32 to vector<8x1xf32>
      %44 = arith.mulf %42, %43 : vector<8x1xf32>
      %cst_28 = arith.constant 0.000000e+00 : f32
      %45 = vector.broadcast %cst_28 : f32 to vector<8x1xf32>
      %c0_29 = arith.constant 0 : index
      %c0_30 = arith.constant 0 : index
      %46 = vector.load %arg9[%c0_29, %c0_30] : memref<8x256xf32, #tpu.memory_space<vmem>>, vector<8x128xf32>
      %c0_31 = arith.constant 0 : index
      %c0_32 = arith.constant 0 : index
      %c0_33 = arith.constant 0 : index
      %47 = vector.load %arg4[%c0_31, %c0_32, %c0_33] : memref<1x1x256xf32, #tpu.memory_space<vmem>>, vector<1x1x128xf32>
      %48 = vector.shape_cast %47 : vector<1x1x128xf32> to vector<1x128xf32>
      %49 = vector.broadcast %48 : vector<1x128xf32> to vector<8x128xf32>
      %50 = arith.addf %46, %49 : vector<8x128xf32>
      %51 = vector.broadcast %44 : vector<8x1xf32> to vector<8x128xf32>
      %52 = arith.subf %50, %51 : vector<8x128xf32>
      %53 = arith.mulf %52, %52 : vector<8x128xf32>
      %cst_34 = arith.constant dense<0.000000e+00> : vector<8xf32>
      %54 = vector.multi_reduction <add>, %53, %cst_34 [1] : vector<8x128xf32> to vector<8xf32>
      %55 = vector.shape_cast %54 : vector<8xf32> to vector<8x1xf32>
      %56 = arith.addf %45, %55 : vector<8x1xf32>
      %c0_35 = arith.constant 0 : index
      %c128_36 = arith.constant 128 : index
      %57 = vector.load %arg9[%c0_35, %c128_36] : memref<8x256xf32, #tpu.memory_space<vmem>>, vector<8x128xf32>
      %c0_37 = arith.constant 0 : index
      %c0_38 = arith.constant 0 : index
      %c128_39 = arith.constant 128 : index
      %58 = vector.load %arg4[%c0_37, %c0_38, %c128_39] : memref<1x1x256xf32, #tpu.memory_space<vmem>>, vector<1x1x128xf32>
      %59 = vector.shape_cast %58 : vector<1x1x128xf32> to vector<1x128xf32>
      %60 = vector.broadcast %59 : vector<1x128xf32> to vector<8x128xf32>
      %61 = arith.addf %57, %60 : vector<8x128xf32>
      %62 = vector.broadcast %44 : vector<8x1xf32> to vector<8x128xf32>
      %63 = arith.subf %61, %62 : vector<8x128xf32>
      %64 = arith.mulf %63, %63 : vector<8x128xf32>
      %cst_40 = arith.constant dense<0.000000e+00> : vector<8xf32>
      %65 = vector.multi_reduction <add>, %64, %cst_40 [1] : vector<8x128xf32> to vector<8xf32>
      %66 = vector.shape_cast %65 : vector<8xf32> to vector<8x1xf32>
      %67 = arith.addf %56, %66 : vector<8x1xf32>
      %cst_41 = arith.constant 3.906250e-03 : f32
      %68 = vector.broadcast %cst_41 : f32 to vector<8x1xf32>
      %69 = arith.mulf %67, %68 : vector<8x1xf32>
      %cst_42 = arith.constant 9.99999974E-6 : f32
      %70 = vector.broadcast %cst_42 : f32 to vector<8x1xf32>
      %71 = arith.addf %69, %70 : vector<8x1xf32>
      %72 = math.rsqrt %71 : vector<8x1xf32>
      %c0_43 = arith.constant 0 : index
      %c0_44 = arith.constant 0 : index
      %73 = vector.load %arg9[%c0_43, %c0_44] : memref<8x256xf32, #tpu.memory_space<vmem>>, vector<8x128xf32>
      %c0_45 = arith.constant 0 : index
      %c0_46 = arith.constant 0 : index
      %c0_47 = arith.constant 0 : index
      %74 = vector.load %arg4[%c0_45, %c0_46, %c0_47] : memref<1x1x256xf32, #tpu.memory_space<vmem>>, vector<1x1x128xf32>
      %75 = vector.shape_cast %74 : vector<1x1x128xf32> to vector<1x128xf32>
      %76 = vector.broadcast %75 : vector<1x128xf32> to vector<8x128xf32>
      %77 = arith.addf %73, %76 : vector<8x128xf32>
      %78 = vector.broadcast %44 : vector<8x1xf32> to vector<8x128xf32>
      %79 = arith.subf %77, %78 : vector<8x128xf32>
      %80 = vector.broadcast %72 : vector<8x1xf32> to vector<8x128xf32>
      %81 = arith.mulf %79, %80 : vector<8x128xf32>
      %c0_48 = arith.constant 0 : index
      %c0_49 = arith.constant 0 : index
      %c0_50 = arith.constant 0 : index
      %82 = vector.load %arg5[%c0_48, %c0_49, %c0_50] : memref<1x1x256xf32, #tpu.memory_space<vmem>>, vector<1x1x128xf32>
      %83 = vector.shape_cast %82 : vector<1x1x128xf32> to vector<1x128xf32>
      %84 = vector.broadcast %83 : vector<1x128xf32> to vector<8x128xf32>
      %85 = arith.mulf %81, %84 : vector<8x128xf32>
      %c0_51 = arith.constant 0 : index
      %c0_52 = arith.constant 0 : index
      %c0_53 = arith.constant 0 : index
      %86 = vector.load %arg6[%c0_51, %c0_52, %c0_53] : memref<1x1x256xf32, #tpu.memory_space<vmem>>, vector<1x1x128xf32>
      %87 = vector.shape_cast %86 : vector<1x1x128xf32> to vector<1x128xf32>
      %88 = vector.broadcast %87 : vector<1x128xf32> to vector<8x128xf32>
      %89 = arith.addf %85, %88 : vector<8x128xf32>
      %cst_54 = arith.constant 5.000000e-01 : f32
      %90 = vector.broadcast %cst_54 : f32 to vector<8x128xf32>
      %91 = arith.mulf %90, %89 : vector<8x128xf32>
      %cst_55 = arith.constant 0.707106769 : f32
      %92 = vector.broadcast %cst_55 : f32 to vector<8x128xf32>
      %93 = arith.mulf %89, %92 : vector<8x128xf32>
      %94 = math.erf %93 : vector<8x128xf32>
      %cst_56 = arith.constant 1.000000e+00 : f32
      %95 = vector.broadcast %cst_56 : f32 to vector<8x128xf32>
      %96 = arith.addf %95, %94 : vector<8x128xf32>
      %97 = arith.mulf %91, %96 : vector<8x128xf32>
      %c0_57 = arith.constant 0 : index
      %c0_58 = arith.constant 0 : index
      %c0_59 = arith.constant 0 : index
      %98 = vector.load %arg8[%c0_57, %c0_58, %c0_59] : memref<2x8x128xf32, #tpu.memory_space<vmem>>, vector<1x8x128xf32>
      %99 = vector.shape_cast %98 : vector<1x8x128xf32> to vector<8x128xf32>
      %100 = arith.addf %97, %99 : vector<8x128xf32>
      %c0_60 = arith.constant 0 : index
      %c0_61 = arith.constant 0 : index
      %c0_62 = arith.constant 0 : index
      %101 = vector.load %arg8[%c0_60, %c0_61, %c0_62] : memref<2x8x128xf32, #tpu.memory_space<vmem>>, vector<1x8x128xf32>
      %102 = vector.shape_cast %101 : vector<1x8x128xf32> to vector<8x128xf32>
      %103 = vector.shape_cast %100 : vector<8x128xf32> to vector<1x8x128xf32>
      tpu.vector_store %arg8[%c0_60, %c0_61, %c0_62], %103 {strides = array<i32>} : memref<2x8x128xf32, #tpu.memory_space<vmem>>, vector<1x8x128xf32>,
      %c0_63 = arith.constant 0 : index
      %c128_64 = arith.constant 128 : index
      %104 = vector.load %arg9[%c0_63, %c128_64] : memref<8x256xf32, #tpu.memory_space<vmem>>, vector<8x128xf32>
      %c0_65 = arith.constant 0 : index
      %c0_66 = arith.constant 0 : index
      %c128_67 = arith.constant 128 : index
      %105 = vector.load %arg4[%c0_65, %c0_66, %c128_67] : memref<1x1x256xf32, #tpu.memory_space<vmem>>, vector<1x1x128xf32>
      %106 = vector.shape_cast %105 : vector<1x1x128xf32> to vector<1x128xf32>
      %107 = vector.broadcast %106 : vector<1x128xf32> to vector<8x128xf32>
      %108 = arith.addf %104, %107 : vector<8x128xf32>
      %109 = vector.broadcast %44 : vector<8x1xf32> to vector<8x128xf32>
      %110 = arith.subf %108, %109 : vector<8x128xf32>
      %111 = vector.broadcast %72 : vector<8x1xf32> to vector<8x128xf32>
      %112 = arith.mulf %110, %111 : vector<8x128xf32>
      %c0_68 = arith.constant 0 : index
      %c0_69 = arith.constant 0 : index
      %c128_70 = arith.constant 128 : index
      %113 = vector.load %arg5[%c0_68, %c0_69, %c128_70] : memref<1x1x256xf32, #tpu.memory_space<vmem>>, vector<1x1x128xf32>
      %114 = vector.shape_cast %113 : vector<1x1x128xf32> to vector<1x128xf32>
      %115 = vector.broadcast %114 : vector<1x128xf32> to vector<8x128xf32>
      %116 = arith.mulf %112, %115 : vector<8x128xf32>
      %c0_71 = arith.constant 0 : index
      %c0_72 = arith.constant 0 : index
      %c128_73 = arith.constant 128 : index
      %117 = vector.load %arg6[%c0_71, %c0_72, %c128_73] : memref<1x1x256xf32, #tpu.memory_space<vmem>>, vector<1x1x128xf32>
      %118 = vector.shape_cast %117 : vector<1x1x128xf32> to vector<1x128xf32>
      %119 = vector.broadcast %118 : vector<1x128xf32> to vector<8x128xf32>
      %120 = arith.addf %116, %119 : vector<8x128xf32>
      %cst_74 = arith.constant 5.000000e-01 : f32
      %121 = vector.broadcast %cst_74 : f32 to vector<8x128xf32>
      %122 = arith.mulf %121, %120 : vector<8x128xf32>
      %cst_75 = arith.constant 0.707106769 : f32
      %123 = vector.broadcast %cst_75 : f32 to vector<8x128xf32>
      %124 = arith.mulf %120, %123 : vector<8x128xf32>
      %125 = math.erf %124 : vector<8x128xf32>
      %cst_76 = arith.constant 1.000000e+00 : f32
      %126 = vector.broadcast %cst_76 : f32 to vector<8x128xf32>
      %127 = arith.addf %126, %125 : vector<8x128xf32>
      %128 = arith.mulf %122, %127 : vector<8x128xf32>
      %c1 = arith.constant 1 : index
      %c0_77 = arith.constant 0 : index
      %c0_78 = arith.constant 0 : index
      %129 = vector.load %arg8[%c1, %c0_77, %c0_78] : memref<2x8x128xf32, #tpu.memory_space<vmem>>, vector<1x8x128xf32>
      %130 = vector.shape_cast %129 : vector<1x8x128xf32> to vector<8x128xf32>
      %131 = arith.addf %128, %130 : vector<8x128xf32>
      %c1_79 = arith.constant 1 : index
      %c0_80 = arith.constant 0 : index
      %c0_81 = arith.constant 0 : index
      %132 = vector.load %arg8[%c1_79, %c0_80, %c0_81] : memref<2x8x128xf32, #tpu.memory_space<vmem>>, vector<1x8x128xf32>
      %133 = vector.shape_cast %132 : vector<1x8x128xf32> to vector<8x128xf32>
      %134 = vector.shape_cast %131 : vector<8x128xf32> to vector<1x8x128xf32>
      tpu.vector_store %arg8[%c1_79, %c0_80, %c0_81], %134 {strides = array<i32>} : memref<2x8x128xf32, #tpu.memory_space<vmem>>, vector<1x8x128xf32>,
    } else {
    }
    %c3_i32 = arith.constant 3 : i32
    %21 = arith.cmpi eq, %arg0, %c3_i32 : i32
    %c1_i32_13 = arith.constant 1 : i32
    %22 = arith.cmpi eq, %arg1, %c1_i32_13 : i32
    %23 = arith.andi %21, %22 : i1
    %24 = arith.extui %23 : i1 to i32
    %c0_i32_14 = arith.constant 0 : i32
    %25 = arith.cmpi ne, %24, %c0_i32_14 : i32
    scf.if %25 {
      %c0_15 = arith.constant 0 : index
      %c0_16 = arith.constant 0 : index
      %c0_17 = arith.constant 0 : index
      %26 = vector.load %arg8[%c0_15, %c0_16, %c0_17] : memref<2x8x128xf32, #tpu.memory_space<vmem>>, vector<1x8x128xf32>
      %27 = vector.shape_cast %26 : vector<1x8x128xf32> to vector<8x128xf32>
      %28 = arith.truncf %27 : vector<8x128xf32> to vector<8x128xbf16>
      %c0_18 = arith.constant 0 : index
      %c0_19 = arith.constant 0 : index
      %29 = vector.load %arg7[%c0_18, %c0_19] : memref<8x256xbf16, #tpu.memory_space<vmem>>, vector<8x128xbf16>
      tpu.vector_store %arg7[%c0_18, %c0_19], %28 {strides = array<i32>} : memref<8x256xbf16, #tpu.memory_space<vmem>>, vector<8x128xbf16>,
      %c1 = arith.constant 1 : index
      %c0_20 = arith.constant 0 : index
      %c0_21 = arith.constant 0 : index
      %30 = vector.load %arg8[%c1, %c0_20, %c0_21] : memref<2x8x128xf32, #tpu.memory_space<vmem>>, vector<1x8x128xf32>
      %31 = vector.shape_cast %30 : vector<1x8x128xf32> to vector<8x128xf32>
      %32 = arith.truncf %31 : vector<8x128xf32> to vector<8x128xbf16>
      %c0_22 = arith.constant 0 : index
      %c128 = arith.constant 128 : index
      %33 = vector.load %arg7[%c0_22, %c128] : memref<8x256xbf16, #tpu.memory_space<vmem>>, vector<8x128xbf16>
      tpu.vector_store %arg7[%c0_22, %c128], %32 {strides = array<i32>} : memref<8x256xbf16, #tpu.memory_space<vmem>>, vector<8x128xbf16>,
    } else {
    }
    return
  }
  func.func @transform_0(%arg0: i32, %arg1: i32) -> (i32, i32) {
    %c0_i32 = arith.constant 0 : i32
    %c0_i32_0 = arith.constant 0 : i32
    %c0_i32_1 = arith.constant 0 : i32
    return %c0_i32, %c0_i32_0 : i32, i32
  }
  func.func @transform_1(%arg0: i32, %arg1: i32) -> (i32, i32, i32) {
    %c0_i32 = arith.constant 0 : i32
    %c0_i32_0 = arith.constant 0 : i32
    return %arg0, %arg1, %c0_i32 : i32, i32, i32
  }
  func.func @transform_2(%arg0: i32, %arg1: i32) -> (i32, i32, i32) {
    %c0_i32 = arith.constant 0 : i32
    %c0_i32_0 = arith.constant 0 : i32
    %c0_i32_1 = arith.constant 0 : i32
    return %arg0, %c0_i32, %c0_i32_0 : i32, i32, i32
  }
  func.func @transform_3(%arg0: i32, %arg1: i32) -> (i32, i32, i32) {
    %c0_i32 = arith.constant 0 : i32
    %c0_i32_0 = arith.constant 0 : i32
    %c0_i32_1 = arith.constant 0 : i32
    return %arg0, %c0_i32, %c0_i32_0 : i32, i32, i32
  }
  func.func @transform_4(%arg0: i32, %arg1: i32) -> (i32, i32, i32) {
    %c0_i32 = arith.constant 0 : i32
    %c0_i32_0 = arith.constant 0 : i32
    %c0_i32_1 = arith.constant 0 : i32
    return %arg0, %c0_i32, %c0_i32_0 : i32, i32, i32
  }
  func.func @transform_5(%arg0: i32, %arg1: i32) -> (i32, i32) {
    %c0_i32 = arith.constant 0 : i32
    %c0_i32_0 = arith.constant 0 : i32
    %c0_i32_1 = arith.constant 0 : i32
    return %c0_i32, %c0_i32_0 : i32, i32
  }
}

</mosaic_0001>

<llo_original>
// kernel: tpu_custom_call.1
$region0: #{tpu_custom_call.1}
  #allocation0 [shape = 'u32[]', space=smem, size = 0x4, offset = 0x4, fixed_abs, tag = 'smem constant byte address 0x4 - core index']
  #allocation1 [shape = 'u32[144,128]{1,0:T(1,128)}', space=vmem, size = 0x12000, scoped, tag = 'internal scratch']
  #allocation2 [shape = 'f32[2,8,128]{2,1,0:T(8,128)}', space=vmem, size = 0x2000, scoped, tag = 'scratch operand']
  #allocation3 [shape = 'f32[8,256]{1,0:T(8,128)}', space=vmem, size = 0x2000, scoped, tag = 'scratch operand']
  %s0 = inlined_call_operand.hbm [shape: f32[8,256], index: 0, kind: input, shape index: {}]
  %s1 = inlined_call_operand.hbm [shape: bf16[4,256,256], index: 1, kind: input, shape index: {}]
  %s2 = inlined_call_operand.hbm [shape: f32[4,1,256], index: 2, kind: input, shape index: {}]
  %s3 = inlined_call_operand.vmem [shape: f32[4,1,256], index: 3, kind: input, shape index: {}]
  %s4 = inlined_call_operand.hbm [shape: f32[4,1,256], index: 4, kind: input, shape index: {}]
  %s5 = inlined_call_operand.hbm [shape: bf16[8,256], index: 5, kind: output, shape index: {}]
  %s6 = sld [smem:[#allocation0]]
  $region85: #{tpu_custom_call.1} parent=0
    _
  %s8 = ssub.s32 1, %s6
  %s9 = scalar_select 0, %s8, %s6
  $region1: #{tpu_custom_call.1} parent=0
    #allocation4 [shape = 'u8[8192]{0}', space=vmem, size = 0x2000, scoped, tag = 'input window, operand 0, single buffered']
    #allocation5 [shape = 's32[2]{0}', space=sflag, size = 0x8, scoped, tag = 'scoped memory for tpu_custom_call.1']
    #allocation6 [shape = 's32[2]{0}', space=sflag, size = 0x8, scoped, tag = 'scoped memory for tpu_custom_call.1']
    #allocation7 [shape = 'u8[131072]{0}', space=vmem, size = 0x20000, scoped, tag = 'input window, operand 1']
    #allocation8 [shape = 's32[2]{0}', space=sflag, size = 0x8, scoped, tag = 'scoped memory for tpu_custom_call.1']
    #allocation9 [shape = 'u8[2048]{0}', space=vmem, size = 0x800, scoped, tag = 'input window, operand 2']
    #allocation10 [shape = 'u8[2048]{0}', space=vmem, size = 0x800, scoped, tag = 'input window, operand 4']
    #allocation11 [shape = 's32[2]{0}', space=sflag, size = 0x8, scoped, tag = 'scoped memory for tpu_custom_call.1']
    #allocation12 [shape = 'u8[4096]{0}', space=vmem, size = 0x1000, scoped, tag = 'output window, operand 0, single buffered']
    %10 = vsyncpa [#allocation5], 0
    %11 = vsyncpa [#allocation8], 0
    %s12 = scalar_lea.sflag [#allocation8], 1
    %13 = vsyncpa %s12, 0
    %14 = vsyncpa [#allocation11], 0
    %s15 = scalar_lea.sflag [#allocation11], 1
    %16 = vsyncpa %s15, 0
    %17 = vsyncpa [#allocation6], 0
    loop: start=0, step=1, limit=10
    $region2: #{tpu_custom_call.1} parent=1 // loop_pre_header
      _
    $region3: #{tpu_custom_call.1} parent=1 // loop_header
      %s19 = sphi 0, %s23
      %p20 = scmp.ge.s32.totalorder %s19, 10
      %s26 = sphi 0, %s38
      %s27 = sphi 0, %s34
      %s28 = sphi 0, %s26
      %s29 = sphi 0, %s27
      %s30 = sphi 0, %s28
      %s31 = sphi 0, %s29
      %s39 = sphi 0, %s39
      %s41 = sphi 0, %s39
      %s42 = sphi 0, %s41
      %s56 = sphi 0, %s42
      %s64 = sphi 0, %s66
      %s67 = sphi 0, %s64
      %s68 = sphi 0, %s67
      %s84 = sphi 0, %s68
      %s90 = sphi 0, %s92
      %s93 = sphi 0, %s90
      %s94 = sphi 0, %s93
      %s110 = sphi 0, %s94
      %s116 = sphi 0, %s118
      %s119 = sphi 0, %s116
      %s120 = sphi 0, %s119
      %s136 = sphi 0, %s120
      %s142 = sphi 0, %s144
      %s145 = sphi 0, %s142
      %s146 = sphi 0, %s145
      %s162 = sphi 0, %s146
      %s166 = sphi 0, %s166
      %s168 = sphi 0, %s166
      %s169 = sphi 0, %s168
      %s183 = sphi 0, %s169
    $region4: #{tpu_custom_call.1} parent=1 // loop_header_branch
      %22 = sbr.rel (%p20) target = $region8
    $region5: #{tpu_custom_call.1} parent=1 // loop_body
      %s24 = ssub.s32 %s19, 1
      %s25 = ssub.s32 %s19, 2
      %s32 = sadd.s32 1, %s27
      %p33 = scmp.ge.s32.totalorder %s32, 2
      %s34 = scalar_select %p33, 0, %s32
      %s35 = sadd.s32 1, %s26
      %s36 = scalar_select %p33, %s35, %s26
      %p37 = scmp.ge.s32.totalorder %s36, 4
      %s38 = scalar_select %p37, 0, %s36
      %s40 = sadd.s32 %s39, 1
      %p43 = scmp.eq.s32.totalorder %s19, 7
      %p44 = scmp.ne.s32.totalorder %s39, %s41
      %p45 = scmp.eq.s32.totalorder %s19, 0
      %p46 = por %p44, %p45
      %p47 = scmp.ne.s32.totalorder %s39, %s41
      %p48 = scmp.eq.s32.totalorder %s24, 7
      %p49 = por %p47, %p48
      %p50 = scmp.ne.s32.totalorder %s41, %s42
      %p51 = scmp.eq.s32.totalorder %s24, 0
      %p52 = por %p50, %p51
      %p53 = scmp.ne.s32.totalorder %s41, %s42
      %p54 = scmp.eq.s32.totalorder %s25, 7
      %p55 = por %p53, %p54
      %p57 = scmp.ne.s32.totalorder %s42, %s56
      %p58 = scmp.eq.s32.totalorder %s25, 0
      %p59 = por %p57, %p58
      %s60 = ssub.s32 %s26, %s38
      %s61 = ssub.s32 %s27, %s34
      %s62 = sor.u32 %s60, %s61
      %p63 = scmp.eq.s32.totalorder %s62, 0
      %s65 = sadd.s32 %s64, 1
      %s66 = scalar_select %p63, %s64, %s65
      %p69 = pneg %p63
      %p70 = scmp.eq.s32.totalorder %s19, 7
      %p71 = por %p69, %p70
      %p72 = scmp.ne.s32.totalorder %s64, %s67
      %p73 = scmp.eq.s32.totalorder %s19, 0
      %p74 = por %p72, %p73
      %p75 = scmp.ne.s32.totalorder %s64, %s67
      %p76 = scmp.eq.s32.totalorder %s24, 7
      %p77 = por %p75, %p76
      %p78 = scmp.ne.s32.totalorder %s67, %s68
      %p79 = scmp.eq.s32.totalorder %s24, 0
      %p80 = por %p78, %p79
      %p81 = scmp.ne.s32.totalorder %s67, %s68
      %p82 = scmp.eq.s32.totalorder %s25, 7
      %p83 = por %p81, %p82
      %p85 = scmp.ne.s32.totalorder %s68, %s84
      %p86 = scmp.eq.s32.totalorder %s25, 0
      %p87 = por %p85, %p86
      %s88 = ssub.s32 %s26, %s38
      %p89 = scmp.eq.s32.totalorder %s88, 0
      %s91 = sadd.s32 %s90, 1
      %s92 = scalar_select %p89, %s90, %s91
      %p95 = pneg %p89
      %p96 = scmp.eq.s32.totalorder %s19, 7
      %p97 = por %p95, %p96
      %p98 = scmp.ne.s32.totalorder %s90, %s93
      %p99 = scmp.eq.s32.totalorder %s19, 0
      %p100 = por %p98, %p99
      %p101 = scmp.ne.s32.totalorder %s90, %s93
      %p102 = scmp.eq.s32.totalorder %s24, 7
      %p103 = por %p101, %p102
      %p104 = scmp.ne.s32.totalorder %s93, %s94
      %p105 = scmp.eq.s32.totalorder %s24, 0
      %p106 = por %p104, %p105
      %p107 = scmp.ne.s32.totalorder %s93, %s94
      %p108 = scmp.eq.s32.totalorder %s25, 7
      %p109 = por %p107, %p108
      %p111 = scmp.ne.s32.totalorder %s94, %s110
      %p112 = scmp.eq.s32.totalorder %s25, 0
      %p113 = por %p111, %p112
      %s114 = ssub.s32 %s26, %s38
      %p115 = scmp.eq.s32.totalorder %s114, 0
      %s117 = sadd.s32 %s116, 1
      %s118 = scalar_select %p115, %s116, %s117
      %p121 = pneg %p115
      %p122 = scmp.eq.s32.totalorder %s19, 7
      %p123 = por %p121, %p122
      %p124 = scmp.ne.s32.totalorder %s116, %s119
      %p125 = scmp.eq.s32.totalorder %s19, 0
      %p126 = por %p124, %p125
      %p127 = scmp.ne.s32.totalorder %s116, %s119
      %p128 = scmp.eq.s32.totalorder %s24, 7
      %p129 = por %p127, %p128
      %p130 = scmp.ne.s32.totalorder %s119, %s120
      %p131 = scmp.eq.s32.totalorder %s24, 0
      %p132 = por %p130, %p131
      %p133 = scmp.ne.s32.totalorder %s119, %s120
      %p134 = scmp.eq.s32.totalorder %s25, 7
      %p135 = por %p133, %p134
      %p137 = scmp.ne.s32.totalorder %s120, %s136
      %p138 = scmp.eq.s32.totalorder %s25, 0
      %p139 = por %p137, %p138
      %s140 = ssub.s32 %s26, %s38
      %p141 = scmp.eq.s32.totalorder %s140, 0
      %s143 = sadd.s32 %s142, 1
      %s144 = scalar_select %p141, %s142, %s143
      %p147 = pneg %p141
      %p148 = scmp.eq.s32.totalorder %s19, 7
      %p149 = por %p147, %p148
      %p150 = scmp.ne.s32.totalorder %s142, %s145
      %p151 = scmp.eq.s32.totalorder %s19, 0
      %p152 = por %p150, %p151
      %p153 = scmp.ne.s32.totalorder %s142, %s145
      %p154 = scmp.eq.s32.totalorder %s24, 7
      %p155 = por %p153, %p154
      %p156 = scmp.ne.s32.totalorder %s145, %s146
      %p157 = scmp.eq.s32.totalorder %s24, 0
      %p158 = por %p156, %p157
      %p159 = scmp.ne.s32.totalorder %s145, %s146
      %p160 = scmp.eq.s32.totalorder %s25, 7
      %p161 = por %p159, %p160
      %p163 = scmp.ne.s32.totalorder %s146, %s162
      %p164 = scmp.eq.s32.totalorder %s25, 0
      %p165 = por %p163, %p164
      %s167 = sadd.s32 %s166, 1
      %p170 = scmp.eq.s32.totalorder %s19, 7
      %p171 = scmp.ne.s32.totalorder %s166, %s168
      %p172 = scmp.eq.s32.totalorder %s19, 0
      %p173 = por %p171, %p172
      %p174 = scmp.ne.s32.totalorder %s166, %s168
      %p175 = scmp.eq.s32.totalorder %s24, 7
      %p176 = por %p174, %p175
      %p177 = scmp.ne.s32.totalorder %s168, %s169
      %p178 = scmp.eq.s32.totalorder %s24, 0
      %p179 = por %p177, %p178
      %p180 = scmp.ne.s32.totalorder %s168, %s169
      %p181 = scmp.eq.s32.totalorder %s25, 7
      %p182 = por %p180, %p181
      %p184 = scmp.ne.s32.totalorder %s169, %s183
      %p185 = scmp.eq.s32.totalorder %s25, 0
      %p186 = por %p184, %p185
      %p187 = scmp.le.s32.totalorder 1, %s19
      %p188 = scmp.lt.s32.totalorder %s19, 9
      %p189 = pnand %p187, %p188
      %p190 = pneg %p189
      // Predicated region
      $region9: #{tpu_custom_call.1} parent=5 // pred_check
        _
      $region10: #{tpu_custom_call.1} parent=5 // pred_check_branch
        %192 = sbr.rel (%p189) target = $region12
      $region11: #{tpu_custom_call.1} parent=5 // pred_region
        %s193 = ssub.s32 %s19, 1
        // Predicated region
        $region13: #{tpu_custom_call.1} parent=11 // pred_check
          %p194 = pneg %p52
        $region14: #{tpu_custom_call.1} parent=11 // pred_check_branch
          %196 = sbr.rel (%p194) target = $region16
        $region15: #{tpu_custom_call.1} parent=11 // pred_region
          %s198 = ssub.s32 256, 256
          %199 = vsyncadd [#allocation5], %s198
          %s201 = sshll.u32 [#allocation4], 4
          %s202 = int_to_ptr.vmem [resolvable:$true] %s201
          %204 = dma.hbm_to_vmem [thread:$0]  %s0, 256, %s202, [#allocation5]
        $region16: #{tpu_custom_call.1} parent=11 // pred_fallthru
          _
      $region12: #{tpu_custom_call.1} parent=5 // pred_fallthru
        _
      %p205 = scmp.lt.s32.totalorder %s19, 8
      // Predicated region
      $region17: #{tpu_custom_call.1} parent=5 // pred_check
        %p206 = pneg %p205
      $region18: #{tpu_custom_call.1} parent=5 // pred_check_branch
        %208 = sbr.rel (%p206) target = $region20
      $region19: #{tpu_custom_call.1} parent=5 // pred_region
        // Predicated region
        $region21: #{tpu_custom_call.1} parent=19 // pred_check
          %p209 = pneg %p74
        $region22: #{tpu_custom_call.1} parent=19 // pred_check_branch
          %211 = sbr.rel (%p209) target = $region24
        $region23: #{tpu_custom_call.1} parent=19 // pred_region
          %s212 = sand.u32 %s19, 1
          %s213 = scalar_lea.sflag [#allocation8], %s212
          %s214 = sand.u32 %s64, 1
          %s215 = smul.addr %s214, 128
          %s216 = scalar_lea.vmem [#allocation7], %s215
          %s217 = smul.u32 16, %s27
          %s219 = ssub.s32 2048, 2048
          %220 = vsyncadd %s213, %s219
          %s221 = smul.addr %s217, 2
          %s222 = smul.addr %s26, 64
          %s223 = sadd.s32 %s221, %s222
          %s224 = smul.addr %s223, 64
          %s225 = scalar_lea.hbm %s1, %s224
          %s226 = sshll.u32 %s216, 4
          %s227 = int_to_ptr.vmem [resolvable:$true] %s226
          %232 = dma.hbm_to_vmem [thread:$0]  %s225, 2048, %s227, %s213, 128, 128, 8
        $region24: #{tpu_custom_call.1} parent=19 // pred_fallthru
          _
        // Predicated region
        $region25: #{tpu_custom_call.1} parent=19 // pred_check
          %p233 = pneg %p100
        $region26: #{tpu_custom_call.1} parent=19 // pred_check_branch
          %235 = sbr.rel (%p233) target = $region28
        $region27: #{tpu_custom_call.1} parent=19 // pred_region
          %s236 = sand.u32 %s19, 1
          %s237 = scalar_lea.sflag [#allocation8], %s236
          %s238 = sand.u32 %s90, 1
          %s239 = smul.addr %s238, 2
          %s240 = scalar_lea.vmem [#allocation9], %s239
          %s242 = ssub.s32 32, 32
          %243 = vsyncadd %s237, %s242
          %s244 = smul.addr %s26, 2
          %s245 = smul.addr %s244, 16
          %s246 = scalar_lea.hbm %s2, %s245
          %s248 = sshll.u32 %s240, 4
          %s249 = int_to_ptr.vmem [resolvable:$true] %s248
          %251 = dma.hbm_to_vmem [thread:$0]  %s246, 32, %s249, %s237
        $region28: #{tpu_custom_call.1} parent=19 // pred_fallthru
          _
        // Predicated region
        $region29: #{tpu_custom_call.1} parent=19 // pred_check
          %p252 = pneg %p126
        $region30: #{tpu_custom_call.1} parent=19 // pred_check_branch
          %254 = sbr.rel (%p252) target = $region32
        $region31: #{tpu_custom_call.1} parent=19 // pred_region
          %p255 = scmp.lt.s32.totalorder %s26, 3
          %s256 = scalar_select %p255, %s26, 3
          %s257 = smul.addr %s256, 2
          %s258 = scalar_lea.vmem %s3, %s257
        $region32: #{tpu_custom_call.1} parent=19 // pred_fallthru
          _
        // Predicated region
        $region33: #{tpu_custom_call.1} parent=19 // pred_check
          %p259 = pneg %p152
        $region34: #{tpu_custom_call.1} parent=19 // pred_check_branch
          %261 = sbr.rel (%p259) target = $region36
        $region35: #{tpu_custom_call.1} parent=19 // pred_region
          %s262 = sand.u32 %s142, 1
          %s263 = scalar_lea.sflag [#allocation11], %s262
          %s264 = sand.u32 %s142, 1
          %s265 = smul.addr %s264, 2
          %s266 = scalar_lea.vmem [#allocation10], %s265
          %s268 = ssub.s32 32, 32
          %269 = vsyncadd %s263, %s268
          %s270 = smul.addr %s26, 2
          %s271 = smul.addr %s270, 16
          %s272 = scalar_lea.hbm %s4, %s271
          %s274 = sshll.u32 %s266, 4
          %s275 = int_to_ptr.vmem [resolvable:$true] %s274
          %277 = dma.hbm_to_vmem [thread:$0]  %s272, 32, %s275, %s263
        $region36: #{tpu_custom_call.1} parent=19 // pred_fallthru
          _
      $region20: #{tpu_custom_call.1} parent=5 // pred_fallthru
        _
      %p278 = scmp.le.s32.totalorder 1, %s19
      %p279 = scmp.lt.s32.totalorder %s19, 9
      %p280 = pnand %p278, %p279
      %p281 = pneg %p280
      // Predicated region
      $region37: #{tpu_custom_call.1} parent=5 // pred_check
        _
      $region38: #{tpu_custom_call.1} parent=5 // pred_check_branch
        %283 = sbr.rel (%p280) target = $region40
      $region39: #{tpu_custom_call.1} parent=5 // pred_region
        %s284 = ssub.s32 %s19, 1
        // Predicated region
        $region41: #{tpu_custom_call.1} parent=39 // pred_check
          %p285 = pneg %p52
        $region42: #{tpu_custom_call.1} parent=39 // pred_check_branch
          %287 = sbr.rel (%p285) target = $region44
        $region43: #{tpu_custom_call.1} parent=39 // pred_region
          %288 = dma.done [#allocation5], 256
        $region44: #{tpu_custom_call.1} parent=39 // pred_fallthru
          _
        %s289 = sand.u32 %s24, 1
        %s290 = scalar_lea.sflag [#allocation8], %s289
        %s291 = sand.u32 %s67, 1
        %s292 = smul.addr %s291, 128
        %s293 = scalar_lea.vmem [#allocation7], %s292
        // Predicated region
        $region45: #{tpu_custom_call.1} parent=39 // pred_check
          %p294 = pneg %p80
        $region46: #{tpu_custom_call.1} parent=39 // pred_check_branch
          %296 = sbr.rel (%p294) target = $region48
        $region47: #{tpu_custom_call.1} parent=39 // pred_region
          %297 = dma.done %s290, 2048
        $region48: #{tpu_custom_call.1} parent=39 // pred_fallthru
          _
        %s298 = sand.u32 %s24, 1
        %s299 = scalar_lea.sflag [#allocation8], %s298
        %s300 = sand.u32 %s93, 1
        %s301 = smul.addr %s300, 2
        %s302 = scalar_lea.vmem [#allocation9], %s301
        // Predicated region
        $region49: #{tpu_custom_call.1} parent=39 // pred_check
          %p303 = pneg %p106
        $region50: #{tpu_custom_call.1} parent=39 // pred_check_branch
          %305 = sbr.rel (%p303) target = $region52
        $region51: #{tpu_custom_call.1} parent=39 // pred_region
          %306 = dma.done %s299, 32
        $region52: #{tpu_custom_call.1} parent=39 // pred_fallthru
          _
        %s307 = sand.u32 %s145, 1
        %s308 = scalar_lea.sflag [#allocation11], %s307
        %s309 = sand.u32 %s145, 1
        %s310 = smul.addr %s309, 2
        %s311 = scalar_lea.vmem [#allocation10], %s310
        // Predicated region
        $region53: #{tpu_custom_call.1} parent=39 // pred_check
          %p312 = pneg %p158
        $region54: #{tpu_custom_call.1} parent=39 // pred_check_branch
          %314 = sbr.rel (%p312) target = $region56
        $region55: #{tpu_custom_call.1} parent=39 // pred_region
          %315 = dma.done %s308, 32
        $region56: #{tpu_custom_call.1} parent=39 // pred_fallthru
          _
        %p316 = pneg %p52
        %p317 = pneg %p49
        %s318 = sand.u32 %s24, 1
        %s319 = scalar_lea.sflag [#allocation8], %s318
        %s320 = sand.u32 %s67, 1
        %s321 = smul.addr %s320, 128
        %s322 = scalar_lea.vmem [#allocation7], %s321
        %p323 = pneg %p80
        %p324 = pneg %p77
        %s325 = sand.u32 %s24, 1
        %s326 = scalar_lea.sflag [#allocation8], %s325
        %s327 = sand.u32 %s93, 1
        %s328 = smul.addr %s327, 2
        %s329 = scalar_lea.vmem [#allocation9], %s328
        %p330 = pneg %p106
        %p331 = pneg %p103
        %p332 = scmp.lt.s32.totalorder %s28, 3
        %s333 = scalar_select %p332, %s28, 3
        %s334 = smul.addr %s333, 2
        %s335 = scalar_lea.vmem %s3, %s334
        %p336 = pneg %p132
        %p337 = pneg %p129
        %s338 = sand.u32 %s145, 1
        %s339 = scalar_lea.sflag [#allocation11], %s338
        %s340 = sand.u32 %s145, 1
        %s341 = smul.addr %s340, 2
        %s342 = scalar_lea.vmem [#allocation10], %s341
        %p343 = pneg %p158
        %p344 = pneg %p155
        %p345 = pneg %p179
        %p346 = pneg %p176
        %s347 = smul.u32 16, %s29
        %p348 = scmp.lt.s32.totalorder %s28, 3
        %s349 = scalar_select %p348, %s28, 3
        %s350 = smul.addr %s349, 2
        %s351 = scalar_lea.vmem %s3, %s350
        %p353 = scmp.eq.s32.totalorder %s28, 0
        %p354 = scmp.eq.s32.totalorder %s29, 0
        %p355 = pnand %p353, %p354
        %p356 = pneg %p355
        // Predicated region
        $region57: #{tpu_custom_call.1} parent=39 // pred_check
          _
        $region58: #{tpu_custom_call.1} parent=39 // pred_check_branch
          %358 = sbr.rel (%p355) target = $region60
        $region59: #{tpu_custom_call.1} parent=39 // pred_region
          %v359 = vld [vmem:[#allocation4] sm:$0xff]
          %360 = vst [vmem:[#allocation2] sm:$0xff] %v359
          %v361 = vld [vmem:[#allocation4 + $0x8] sm:$0xff]
          %s362 = scalar_lea.vmem [#allocation2], 8
          %363 = vst [vmem:[%s362] sm:$0xff] %v361
        $region60: #{tpu_custom_call.1} parent=39 // pred_fallthru
          _
        // Predicated region
        $region61: #{tpu_custom_call.1} parent=39 // pred_check
          %p364 = pneg %p354
        $region62: #{tpu_custom_call.1} parent=39 // pred_check_branch
          %366 = sbr.rel (%p364) target = $region64
        $region63: #{tpu_custom_call.1} parent=39 // pred_region
          %367 = vst [vmem:[#allocation3] sm:$0xff] 0.0
          %368 = vst [vmem:[#allocation3 + $0x8] sm:$0xff] 0.0
        $region64: #{tpu_custom_call.1} parent=39 // pred_fallthru
          _
        %v369 = vld [vmem:[#allocation3] sm:$0xff]
        %v370 = vld [vmem:[#allocation3 + $0x8] sm:$0xff]
        %s371 = smul.u32 %s29, 8
        %s372 = scalar_lea.vmem [#allocation2], %s371
        %v373 = vld [vmem:[%s372] sm:$0xff]
        %v374 = vld [vmem:[%s293] sm:$0xff]
        %v375 = vld [vmem:[%s293 + $0x8] sm:$0xff]
        %v376 = vld [vmem:[%s293 + $0x10] sm:$0xff]
        %v377 = vld [vmem:[%s293 + $0x18] sm:$0xff]
        %v378 = vld [vmem:[%s293 + $0x20] sm:$0xff]
        %v379 = vld [vmem:[%s293 + $0x28] sm:$0xff]
        %v380 = vld [vmem:[%s293 + $0x30] sm:$0xff]
        %v381 = vld [vmem:[%s293 + $0x38] sm:$0xff]
        %v382 = vld [vmem:[%s293 + $0x40] sm:$0xff]
        %v383 = vld [vmem:[%s293 + $0x48] sm:$0xff]
        %v384 = vld [vmem:[%s293 + $0x50] sm:$0xff]
        %v385 = vld [vmem:[%s293 + $0x58] sm:$0xff]
        %v386 = vld [vmem:[%s293 + $0x60] sm:$0xff]
        %v387 = vld [vmem:[%s293 + $0x68] sm:$0xff]
        %v388 = vld [vmem:[%s293 + $0x70] sm:$0xff]
        %v389 = vld [vmem:[%s293 + $0x78] sm:$0xff]
        %v390 = vpack.c.bf16 %v373, %v373
        %v407 = vunpack.c.l.b16 %v374
        %v408 = vunpack.c.h.b16 %v374
        %v409 = vunpack.c.l.b16 %v375
        %v410 = vunpack.c.h.b16 %v375
        %v411 = vunpack.c.l.b16 %v376
        %v412 = vunpack.c.h.b16 %v376
        %v413 = vunpack.c.l.b16 %v377
        %v414 = vunpack.c.h.b16 %v377
        %v415 = vunpack.c.l.b16 %v378
        %v416 = vunpack.c.h.b16 %v378
        %v417 = vunpack.c.l.b16 %v379
        %v418 = vunpack.c.h.b16 %v379
        %v419 = vunpack.c.l.b16 %v380
        %v420 = vunpack.c.h.b16 %v380
        %v421 = vunpack.c.l.b16 %v381
        %v422 = vunpack.c.h.b16 %v381
        %v423 = vunpack.c.l.b16 %v382
        %v424 = vunpack.c.h.b16 %v382
        %v425 = vunpack.c.l.b16 %v383
        %v426 = vunpack.c.h.b16 %v383
        %v427 = vunpack.c.l.b16 %v384
        %v428 = vunpack.c.h.b16 %v384
        %v429 = vunpack.c.l.b16 %v385
        %v430 = vunpack.c.h.b16 %v385
        %v431 = vunpack.c.l.b16 %v386
        %v432 = vunpack.c.h.b16 %v386
        %v433 = vunpack.c.l.b16 %v387
        %v434 = vunpack.c.h.b16 %v387
        %v435 = vunpack.c.l.b16 %v388
        %v436 = vunpack.c.h.b16 %v388
        %v437 = vunpack.c.l.b16 %v389
        %v438 = vunpack.c.h.b16 %v389
        %v439 = vpack.c.b16 %v409, %v407
        %v440 = vpack.c.b16 %v410, %v408
        %v441 = vpack.c.b16 %v413, %v411
        %v442 = vpack.c.b16 %v414, %v412
        %v443 = vpack.c.b16 %v417, %v415
        %v444 = vpack.c.b16 %v418, %v416
        %v445 = vpack.c.b16 %v421, %v419
        %v446 = vpack.c.b16 %v422, %v420
        %v447 = vpack.c.b16 %v425, %v423
        %v448 = vpack.c.b16 %v426, %v424
        %v449 = vpack.c.b16 %v429, %v427
        %v450 = vpack.c.b16 %v430, %v428
        %v451 = vpack.c.b16 %v433, %v431
        %v452 = vpack.c.b16 %v434, %v432
        %v453 = vpack.c.b16 %v437, %v435
        %v454 = vpack.c.b16 %v438, %v436
        %471 = vmatprep.subr.bf16.mxu0 %v440
        %472 = vmatpush1.bf16.msra.mxu0 %v439
        %473 = vmatprep.subr.bf16.mxu0 %v442
        %474 = vmatpush1.bf16.msra.mxu0 %v441
        %475 = vmatprep.subr.bf16.mxu0 %v444
        %476 = vmatpush1.bf16.msra.mxu0 %v443
        %477 = vmatprep.subr.bf16.mxu0 %v446
        %478 = vmatpush1.bf16.msra.mxu0 %v445
        %479 = vmatprep.subr.bf16.mxu0 %v448
        %480 = vmatpush1.bf16.msra.mxu0 %v447
        %481 = vmatprep.subr.bf16.mxu0 %v450
        %482 = vmatpush1.bf16.msra.mxu0 %v449
        %483 = vmatprep.subr.bf16.mxu0 %v452
        %484 = vmatpush1.bf16.msra.mxu0 %v451
        %485 = vmatprep.subr.bf16.mxu0 %v454
        %486 = vmatpush1.bf16.msra.mxu0 %v453
        %487 = vmatprep.subr.bf16.mxu0 0
        %488 = vmatpush1.bf16.msra.mxu0 0
        %489 = vmatprep.subr.bf16.mxu0 0
        %490 = vmatpush1.bf16.msra.mxu0 0
        %491 = vmatprep.subr.bf16.mxu0 0
        %492 = vmatpush1.bf16.msra.mxu0 0
        %493 = vmatprep.subr.bf16.mxu0 0
        %494 = vmatpush1.bf16.msra.mxu0 0
        %495 = vmatprep.subr.bf16.mxu0 0
        %496 = vmatpush1.bf16.msra.mxu0 0
        %497 = vmatprep.subr.bf16.mxu0 0
        %498 = vmatpush1.bf16.msra.mxu0 0
        %499 = vmatprep.subr.bf16.mxu0 0
        %500 = vmatpush1.bf16.msra.mxu0 0
        %501 = vmatprep.subr.bf16.mxu0 0
        %502 = vmatpush1.bf16.msra.mxu0 0
        %503 = vmatprep.mubr.bf16.mxu0 0
        %504 = vmatmul.mubr.bf16.gmra.mrb[0].mxu0 %v390
        %v505 = vpop.f32.mrb[0].mxu0
        %v506 = vadd.f32 0.0, %v505
        %v507 = vpop.f32.mrb[0].mxu0
        %v508 = vadd.f32 0.0, %v507
        %v509 = vpop.f32.mrb[0].mxu0
        %v510 = vpop.f32.mrb[0].mxu0
        %511 = vdwg.mxu0
        %v512 = vadd.f32 %v369, %v506
        %v513 = vadd.f32 %v370, %v508
        %514 = vst [vmem:[#allocation3] sm:$0xff] %v512
        %515 = vst [vmem:[#allocation3 + $0x8] sm:$0xff] %v513
        %p516 = scmp.eq.s32.totalorder %s29, 1
        // Predicated region
        $region65: #{tpu_custom_call.1} parent=39 // pred_check
          %p517 = pneg %p516
        $region66: #{tpu_custom_call.1} parent=39 // pred_check_branch
          %519 = sbr.rel (%p517) target = $region68
        $region67: #{tpu_custom_call.1} parent=39 // pred_region
          %v520 = vld [vmem:[#allocation3] sm:$0xff]
          %v521 = vld [vmem:[%s302] sm:$0x1]
          %v523 = vlaneseq
          %v524 = vshrl.u32 %v523, 7
          %v525 = vsub.s32 0, %v524
          %v526 = vrot.slane %v521, %v525
          %v528 = vadd.f32 %v520, %v526
          %529 = vadd.xlane.f32.xlu0 %v528
          %v530 = vpop.xlane.xlu0 %529
          %v531 = vadd.f32 %v530, 0.0
          %v532 = vld [vmem:[#allocation3 + $0x8] sm:$0xff]
          %v533 = vld [vmem:[%s302 + $0x1] sm:$0x1]
          %v535 = vlaneseq
          %v536 = vshrl.u32 %v535, 7
          %v537 = vsub.s32 0, %v536
          %v538 = vrot.slane %v533, %v537
          %v540 = vadd.f32 %v532, %v538
          %541 = vadd.xlane.f32.xlu0 %v540
          %v542 = vpop.xlane.xlu0 %541
          %v543 = vadd.f32 %v531, %v542
          %v544 = vmul.f32 %v543, 0.00390625
          %v545 = vsub.f32 %v528, %v544
          %v546 = vmul.f32 %v545, %v545
          %547 = vadd.xlane.f32.xlu0 %v546
          %v548 = vpop.xlane.xlu0 %547
          %v549 = vadd.f32 %v548, 0.0
          %v550 = vsub.f32 %v540, %v544
          %v551 = vmul.f32 %v550, %v550
          %552 = vadd.xlane.f32.xlu0 %v551
          %v553 = vpop.xlane.xlu0 %552
          %v554 = vadd.f32 %v549, %v553
          %v555 = vmul.f32 %v554, 0.00390625
          %v556 = vadd.f32 %v555, 1e-05
          %v557 = vrsqrt.pop %v556
          %v558 = vmul.f32 %v545, %v557
          %v559 = vld [vmem:[%s351] sm:$0x1]
          %v561 = vlaneseq
          %v562 = vshrl.u32 %v561, 7
          %v563 = vsub.s32 0, %v562
          %v564 = vrot.slane %v559, %v563
          %v566 = vmul.f32 %v558, %v564
          %v567 = vld [vmem:[%s311] sm:$0x1]
          %v569 = vlaneseq
          %v570 = vshrl.u32 %v569, 7
          %v571 = vsub.s32 0, %v570
          %v572 = vrot.slane %v567, %v571
          %v574 = vadd.f32 %v566, %v572
          %v575 = vmul.f32 %v574, 0.5
          %v576 = vmul.f32 %v574, 0.70710677
          %v577 = verf.f32.pop %v576
          %v578 = vadd.f32 %v577, 1.0
          %v579 = vmul.f32 %v575, %v578
          %v580 = vld [vmem:[#allocation2] sm:$0xff]
          %v581 = vadd.f32 %v579, %v580
          %582 = vst [vmem:[#allocation2] sm:$0xff] %v581
          %v583 = vld [vmem:[#allocation3 + $0x8] sm:$0xff]
          %v584 = vld [vmem:[%s302 + $0x1] sm:$0x1]
          %v586 = vlaneseq
          %v587 = vshrl.u32 %v586, 7
          %v588 = vsub.s32 0, %v587
          %v589 = vrot.slane %v584, %v588
          %v591 = vadd.f32 %v583, %v589
          %v592 = vsub.f32 %v591, %v544
          %v593 = vmul.f32 %v592, %v557
          %v594 = vld [vmem:[%s351 + $0x1] sm:$0x1]
          %v596 = vlaneseq
          %v597 = vshrl.u32 %v596, 7
          %v598 = vsub.s32 0, %v597
          %v599 = vrot.slane %v594, %v598
          %v601 = vmul.f32 %v593, %v599
          %v602 = vld [vmem:[%s311 + $0x1] sm:$0x1]
          %v604 = vlaneseq
          %v605 = vshrl.u32 %v604, 7
          %v606 = vsub.s32 0, %v605
          %v607 = vrot.slane %v602, %v606
          %v609 = vadd.f32 %v601, %v607
          %v610 = vmul.f32 %v609, 0.5
          %v611 = vmul.f32 %v609, 0.70710677
          %v612 = verf.f32.pop %v611
          %v613 = vadd.f32 %v612, 1.0
          %v614 = vmul.f32 %v610, %v613
          %s615 = scalar_lea.vmem [#allocation2], 8
          %v616 = vld [vmem:[%s615] sm:$0xff]
          %v617 = vadd.f32 %v614, %v616
          %618 = vst [vmem:[%s615] sm:$0xff] %v617
        $region68: #{tpu_custom_call.1} parent=39 // pred_fallthru
          _
        %p619 = scmp.eq.s32.totalorder %s28, 3
        %p620 = pnand %p619, %p516
        %p621 = pneg %p620
        // Predicated region
        $region69: #{tpu_custom_call.1} parent=39 // pred_check
          _
        $region70: #{tpu_custom_call.1} parent=39 // pred_check_branch
          %623 = sbr.rel (%p620) target = $region72
        $region71: #{tpu_custom_call.1} parent=39 // pred_region
          %v624 = vld [vmem:[#allocation2] sm:$0xff]
          %v625 = vpack.c.bf16 %v624, %v624
          %626 = vst [vmem:[#allocation12] sm:$0xf] %v625
          %s627 = scalar_lea.vmem [#allocation2], 8
          %v628 = vld [vmem:[%s627] sm:$0xff]
          %v629 = vpack.c.bf16 %v628, %v628
          %630 = vst [vmem:[#allocation12 + $0x4] sm:$0xf] %v629
        $region72: #{tpu_custom_call.1} parent=39 // pred_fallthru
          _
        // Predicated region
        $region73: #{tpu_custom_call.1} parent=39 // pred_check
          %p631 = pneg %p176
        $region74: #{tpu_custom_call.1} parent=39 // pred_check_branch
          %633 = sbr.rel (%p631) target = $region76
        $region75: #{tpu_custom_call.1} parent=39 // pred_region
          %s635 = ssub.s32 128, 128
          %636 = vsyncadd [#allocation6], %s635
          %s638 = sshll.u32 [#allocation12], 4
          %s639 = int_to_ptr.vmem [resolvable:$true] %s638
          %641 = dma.vmem_to_hbm [thread:$0]  %s639, 128, %s5, [#allocation6]
        $region76: #{tpu_custom_call.1} parent=39 // pred_fallthru
          _
        // Predicated region
        $region77: #{tpu_custom_call.1} parent=39 // pred_check
          %p642 = pneg %p176
        $region78: #{tpu_custom_call.1} parent=39 // pred_check_branch
          %644 = sbr.rel (%p642) target = $region80
        $region79: #{tpu_custom_call.1} parent=39 // pred_region
          %645 = dma.done [#allocation6], 128
        $region80: #{tpu_custom_call.1} parent=39 // pred_fallthru
          _
      $region40: #{tpu_custom_call.1} parent=5 // pred_fallthru
        _
      %p646 = scmp.le.s32.totalorder 2, %s19
      // Predicated region
      $region81: #{tpu_custom_call.1} parent=5 // pred_check
        %p647 = pneg %p646
      $region82: #{tpu_custom_call.1} parent=5 // pred_check_branch
        %649 = sbr.rel (%p647) target = $region84
      $region83: #{tpu_custom_call.1} parent=5 // pred_region
        %s650 = ssub.s32 %s19, 2
      $region84: #{tpu_custom_call.1} parent=5 // pred_fallthru
        _
    $region6: #{tpu_custom_call.1} parent=1 // loop_footer
      %s23 = sadd.s32 1, %s19
    $region7: #{tpu_custom_call.1} parent=1 // loop_footer_branch
      %18 = sbr.rel target = $region3
    $region8: #{tpu_custom_call.1} parent=1 // loop_exit
      _
    %651 = vsyncpa [#allocation5], 1
    %s652 = scalar_lea.sflag [#allocation5], 1
    %653 = vsyncpa %s652, 1
    %654 = vsyncpa [#allocation8], 1
    %s655 = scalar_lea.sflag [#allocation8], 1
    %656 = vsyncpa %s655, 1
    %657 = vsyncpa [#allocation11], 1
    %s658 = scalar_lea.sflag [#allocation11], 1
    %659 = vsyncpa %s658, 1
    %660 = vsyncpa [#allocation6], 1
    %s661 = scalar_lea.sflag [#allocation6], 1
    %662 = vsyncpa %s661, 1

</llo_original>
